<compile_context>
chip_gen: v6e
topology: v6e:2x2x1
jax: 0.10.0
libtpu: 0.0.40
codegen_flags: <defaults>
</compile_context>

<pallas_src>
import functools

import jax
import jax.numpy as jnp
from jax.experimental import pallas as pl
from jax.experimental.pallas import tpu as pltpu

NEG_INF = -1e30          # Python float literal (safe to close over in kernels)
VT_CAP = 2048            # max vocab-tile width per grid step (lanes)


def _round_up(x, m):
    return ((x + m - 1) // m) * m


# ---------------------------------------------------------------------------
# Kernel 1: K/V projection ("KV cache"), computed once per sequence,
# outside the per-timestep loop.
# ---------------------------------------------------------------------------
def _kv_proj_kernel(x_ref, wk_ref, bk_ref, wv_ref, bv_ref, k_ref, v_ref):
    x = x_ref[...]                                               # (Rb, E) bf16
    k = jnp.dot(x, wk_ref[...], preferred_element_type=jnp.float32) + bk_ref[...]
    v = jnp.dot(x, wv_ref[...], preferred_element_type=jnp.float32) + bv_ref[...]
    k_ref[...] = k.astype(k_ref.dtype)
    v_ref[...] = v.astype(v_ref.dtype)


@jax.jit
def encode_kv(text_states, q):
    """text_states (n, S, E) -> K, V (n, S, E) in bf16, via a row-blocked matmul."""
    n, S, E = text_states.shape
    rows = n * S
    Rb = min(_round_up(rows, 8), 512)
    rows_pad = _round_up(rows, Rb)
    x2 = text_states.reshape(rows, E).astype(jnp.bfloat16)
    if rows_pad != rows:
        x2 = jnp.pad(x2, ((0, rows_pad - rows), (0, 0)))

    rmap = lambda i: (i, 0)
    wmap = lambda i: (0, 0)
    k2, v2 = pl.pallas_call(
        _kv_proj_kernel,
        grid=(rows_pad // Rb,),
        in_specs=[pl.BlockSpec((Rb, E), rmap),
                  pl.BlockSpec((E, E), wmap), pl.BlockSpec((1, E), wmap),
                  pl.BlockSpec((E, E), wmap), pl.BlockSpec((1, E), wmap)],
        out_specs=(pl.BlockSpec((Rb, E), rmap),
                   pl.BlockSpec((Rb, E), rmap)),
        out_shape=(jax.ShapeDtypeStruct((rows_pad, E), jnp.bfloat16),
                   jax.ShapeDtypeStruct((rows_pad, E), jnp.bfloat16)),
        compiler_params=pltpu.CompilerParams(
            dimension_semantics=("parallel",)),
    )(x2, q["wk_t"], q["bk"], q["wv_t"], q["bv"])
    return k2[:rows].reshape(n, S, E), v2[:rows].reshape(n, S, E)


# ---------------------------------------------------------------------------
# Kernel 2: one decoder timestep for a batch tile, vocab-tiled on grid axis 1.
#   grid = (num_batch_tiles, num_vocab_tiles)
#   per (i, j): at j==0 compute linear1 + single-head attention into scratch,
#   for every j accumulate online logsumexp + target logit over a vocab tile,
#   at the last j emit per-row NLL loss (masked by `valid`).
# ---------------------------------------------------------------------------
def _timestep_kernel(dec_ref, k_ref, v_ref, tlen_ref, tgt_ref, valid_ref,
                     w1_ref, b1_ref, wq_ref, bq_ref, wo_ref, bo_ref,
                     w2a_ref, w2b_ref, b2_ref,
                     loss_ref, attn_ref,
                     d_scr, ctx_scr, m_scr, s_scr, tl_scr,
                     *, vocab_size, scale):
    j = pl.program_id(1)
    vt = w2a_ref.shape[1]

    # ---- attention / context: computed once per batch tile (j == 0) --------
    @pl.when(j == 0)
    def _():
        dec = dec_ref[...]                                       # (Bb, Hb) bf16
        d = (jnp.dot(dec, w1_ref[...],
                     preferred_element_type=jnp.float32) + b1_ref[...])
        qv = (jnp.dot(d.astype(jnp.bfloat16), wq_ref[...],
                      preferred_element_type=jnp.float32) + bq_ref[...]) * scale
        k = k_ref[...].astype(jnp.float32)                       # (Bb, S, E)
        scores = jnp.sum(qv[:, None, :] * k, axis=-1)            # (Bb, S)
        pos = jax.lax.broadcasted_iota(jnp.int32, scores.shape, 1)
        scores = jnp.where(pos >= tlen_ref[...], NEG_INF, scores)
        m = jnp.max(scores, axis=-1, keepdims=True)
        e = jnp.exp(scores - m)
        attn = e / jnp.sum(e, axis=-1, keepdims=True)            # (Bb, S)
        vv = v_ref[...].astype(jnp.float32)
        ctx = jnp.sum(attn[:, :, None] * vv, axis=1)             # (Bb, E)
        ctx = (jnp.dot(ctx.astype(jnp.bfloat16), wo_ref[...],
                       preferred_element_type=jnp.float32) + bo_ref[...])
        d_scr[...] = d
        ctx_scr[...] = ctx
        attn_ref[...] = attn * valid_ref[...]                    # zero invalid rows
        m_scr[...] = jnp.full_like(m_scr, NEG_INF)
        s_scr[...] = jnp.zeros_like(s_scr)
        tl_scr[...] = jnp.zeros_like(tl_scr)

    # ---- vocab tile j: logits + online logsumexp + target-logit gather -----
    logits = (jnp.dot(d_scr[...].astype(jnp.bfloat16), w2a_ref[...],
                      preferred_element_type=jnp.float32)
              + jnp.dot(ctx_scr[...].astype(jnp.bfloat16), w2b_ref[...],
                        preferred_element_type=jnp.float32)
              + b2_ref[...])                                     # (Bb, Vt)
    col = jax.lax.broadcasted_iota(jnp.int32, logits.shape, 1) + j * vt
    logits = jnp.where(col < vocab_size, logits, NEG_INF)        # mask vocab pad

    m_prev = m_scr[...]
    m_new = jnp.maximum(m_prev, jnp.max(logits, axis=-1, keepdims=True))
    s_scr[...] = (s_scr[...] * jnp.exp(m_prev - m_new)
                  + jnp.sum(jnp.exp(logits - m_new), axis=-1, keepdims=True))
    m_scr[...] = m_new
    tl_scr[...] = tl_scr[...] + jnp.sum(
        jnp.where(col == tgt_ref[...], logits, 0.0), axis=-1, keepdims=True)

    # ---- finalize: per-row NLL = logsumexp(logits) - logits[target] --------
    @pl.when(j == pl.num_programs(1) - 1)
    def _():
        lse = m_scr[...] + jnp.log(s_scr[...])
        loss_ref[...] = (lse - tl_scr[...]) * valid_ref[...]


@functools.partial(jax.jit, static_argnames=("vocab_size",))
def timestep_pallas(dec_h, k_states, v_states, text_length, targets, valid, q,
                    *, vocab_size):
    """One decoder timestep for the whole (masked) batch.

    dec_h:       (n, Hb) BERT last-token states (f32)
    k_states:    (n, S, E) cached K projection (bf16)
    v_states:    (n, S, E) cached V projection (bf16)
    text_length: (n,) int32, targets: (n,) int32, valid: (n,) 0/1 weights
    Returns: loss (n,) f32 (masked), attn (n, S) f32 (masked).
    """
    n, S, E = k_states.shape
    Hb = dec_h.shape[-1]
    V_pad = q["w2a_t"].shape[-1]
    Vt = min(V_pad, VT_CAP)
    nv = V_pad // Vt

    Bb = 128 if n >= 128 else _round_up(n, 8)
    n_pad = _round_up(n, Bb)
    nb = n_pad // Bb

    def pad_rows(a):
        return jnp.pad(a, ((0, n_pad - n),) + ((0, 0),) * (a.ndim - 1))

    dec = pad_rows(dec_h.astype(jnp.bfloat16))
    kk = pad_rows(k_states)
    vv = pad_rows(v_states)
    tlen = pad_rows(text_length.astype(jnp.int32).reshape(n, 1))
    tgt = pad_rows(targets.astype(jnp.int32).reshape(n, 1))
    vld = pad_rows(valid.astype(jnp.float32).reshape(n, 1))

    scale = 1.0 / (float(E) ** 0.5)
    kernel = functools.partial(_timestep_kernel,
                               vocab_size=vocab_size, scale=scale)

    bmap2 = lambda i, j: (i, 0)
    bmap3 = lambda i, j: (i, 0, 0)
    wmap = lambda i, j: (0, 0)
    vtmap = lambda i, j: (0, j)

    loss, attn = pl.pallas_call(
        kernel,
        grid=(nb, nv),
        in_specs=[
            pl.BlockSpec((Bb, Hb), bmap2),
            pl.BlockSpec((Bb, S, E), bmap3),
            pl.BlockSpec((Bb, S, E), bmap3),
            pl.BlockSpec((Bb, 1), bmap2),
            pl.BlockSpec((Bb, 1), bmap2),
            pl.BlockSpec((Bb, 1), bmap2),
            pl.BlockSpec((Hb, E), wmap), pl.BlockSpec((1, E), wmap),
            pl.BlockSpec((E, E), wmap), pl.BlockSpec((1, E), wmap),
            pl.BlockSpec((E, E), wmap), pl.BlockSpec((1, E), wmap),
            pl.BlockSpec((E, Vt), vtmap), pl.BlockSpec((E, Vt), vtmap),
            pl.BlockSpec((1, Vt), vtmap),
        ],
        out_specs=(pl.BlockSpec((Bb, 1), bmap2),
                   pl.BlockSpec((Bb, S), bmap2)),
        out_shape=(jax.ShapeDtypeStruct((n_pad, 1), jnp.float32),
                   jax.ShapeDtypeStruct((n_pad, S), jnp.float32)),
        scratch_shapes=[pltpu.VMEM((Bb, E), jnp.float32),
                        pltpu.VMEM((Bb, E), jnp.float32),
                        pltpu.VMEM((Bb, 1), jnp.float32),
                        pltpu.VMEM((Bb, 1), jnp.float32),
                        pltpu.VMEM((Bb, 1), jnp.float32)],
        compiler_params=pltpu.CompilerParams(
            dimension_semantics=("parallel", "arbitrary"),
            vmem_limit_bytes=48 * 1024 * 1024),
    )(dec, kk, vv, tlen, tgt, vld,
      q["w1_t"], q["b1"], q["wq_t"], q["bq"], q["wo_t"], q["bo"],
      q["w2a_t"], q["w2b_t"], q["b2"])

    return loss[:n, 0], attn[:n]


# ---------------------------------------------------------------------------
# Plain-JAX glue
# ---------------------------------------------------------------------------
def bert_stub(tokens, attention_mask, p):
    # Deterministic stand-in for clinical_bert_wrapper(...)[0][:, -1]
    x = p["emb"][tokens]                                    # (n, L, Hb)
    m = attention_mask[..., None].astype(jnp.float32)
    pooled = (x * m).sum(1) / jnp.maximum(m.sum(1), 1.0)
    last = x[:, -1]
    return jnp.tanh((last + pooled) @ p["wb"] + p["bb"])    # (n, Hb)


def prepare_params(p):
    """One-time host-side transpose to (in, out) layout, bf16 weights,
    vocab padded to a multiple of the vocab tile width."""
    V = p["b2"].shape[-1]
    Vt = min(_round_up(V, 128), VT_CAP)
    V_pad = _round_up(V, Vt)
    bf = lambda x: jnp.asarray(x, jnp.bfloat16)
    f32 = lambda x: jnp.asarray(x, jnp.float32)
    q = {
        "w1_t": bf(p["w1"].T), "b1": f32(p["b1"]),
        "wq_t": bf(p["wq"].T), "bq": f32(p["bq"]),
        "wk_t": bf(p["wk"].T), "bk": f32(p["bk"]),
        "wv_t": bf(p["wv"].T), "bv": f32(p["bv"]),
        "wo_t": bf(p["wo"].T), "bo": f32(p["bo"]),
        "w2a_t": bf(jnp.pad(p["w2a"].T, ((0, 0), (0, V_pad - V)))),
        "w2b_t": bf(jnp.pad(p["w2b"].T, ((0, 0), (0, V_pad - V)))),
        "b2": f32(jnp.pad(p["b2"], ((0, 0), (0, V_pad - V)))),
    }
    return q


def decode_train(params, prepared, text_states, text_length, summary,
                 summary_length, truncate_summary, mask_token_id, vocab_size):
    summary = summary[:, :truncate_summary]
    B, T = summary.shape
    S = text_states.shape[1]

    # K/V cache: computed once per sequence, reused for every timestep.
    k_states, v_states = encode_kv(text_states, prepared)
    text_length = text_length.astype(jnp.int32)

    instance_losses = jnp.zeros((B,), jnp.float32)
    attn_steps = []
    for t in range(1, T - 1):
        valid = (summary_length > t).astype(jnp.float32)   # fixed-shape mask
        partial = jnp.concatenate(
            [summary[:, :t],
             jnp.full((B, 1), mask_token_id, summary.dtype)], axis=1)
        attention_mask = jnp.ones_like(partial)
        dec_h = bert_stub(partial, attention_mask, params)
        targets = summary[:, t]

        loss_t, attn_t = timestep_pallas(dec_h, k_states, v_states,
                                         text_length, targets, valid,
                                         prepared, vocab_size=vocab_size)
        instance_losses = instance_losses + loss_t
        attn_steps.append(attn_t[:, None, :])

    sentence_level_attentions = jnp.concatenate(attn_steps, axis=1)
    decoded_summary_length = jnp.clip(summary_length - 1, 0,
                                      truncate_summary - 1)
    # guard divide-by-zero for degenerate summary_length == 1 (original gives inf)
    denom = jnp.maximum(decoded_summary_length, 1).astype(jnp.float32)
    return {
        "instance_losses": instance_losses / denom,
        "sentence_level_attentions": sentence_level_attentions,
        "decoded_summary_length": decoded_summary_length,
    }


def decoder_forward(params, text_states, text_length, summary, summary_length,
                    truncate_summary, special_tokens):
    prepared = prepare_params(params)
    vocab_size = params["b2"].shape[-1]
    return decode_train(params, prepared, text_states, text_length, summary,
                        summary_length, truncate_summary,
                        special_tokens["mask"], vocab_size)


# ---------------------------------------------------------------------------
# Deterministic parameter init (shapes per Decoder.__init__, PyTorch layout)
# ---------------------------------------------------------------------------
def init_params(key, hidden_size, outdim, vocab_size):
    import numpy as np
    E, Hb, V = outdim, hidden_size, vocab_size
    ks = jax.random.split(key, 10)

    def u(k, shape, fan_in):
        lim = 1.0 / np.sqrt(fan_in)
        return jax.random.uniform(k, shape, jnp.float32, -lim, lim)

    p = {}
    # linear1: hidden_size -> outdim
    p["w1"] = u(ks[0], (E, Hb), Hb)
    p["b1"] = u(ks[1], (1, E), Hb)
    # MultiheadAttention(outdim, 1): in_proj (3E, E), out_proj (E, E)
    in_proj = u(ks[2], (3 * E, E), E)
    p["wq"], p["wk"], p["wv"] = in_proj[:E], in_proj[E:2 * E], in_proj[2 * E:]
    p["bq"] = jnp.zeros((1, E), jnp.float32)
    p["bk"] = jnp.zeros((1, E), jnp.float32)
    p["bv"] = jnp.zeros((1, E), jnp.float32)
    p["wo"] = u(ks[3], (E, E), E)
    p["bo"] = jnp.zeros((1, E), jnp.float32)
    # linear2: 2*outdim -> vocab_size (split along input for the kernel)
    w2 = u(ks[4], (V, 2 * E), 2 * E)
    p["w2a"] = jnp.asarray(w2[:, :E])
    p["w2b"] = jnp.asarray(w2[:, E:])
    p["b2"] = u(ks[5], (1, V), 2 * E)
    # BERT stub params
    p["emb"] = 0.02 * jax.random.normal(ks[6], (V, Hb), jnp.float32)
    p["wb"] = u(ks[7], (Hb, Hb), Hb)
    p["bb"] = jnp.zeros((Hb,), jnp.float32)
    return p


if __name__ == "__main__":
    key = jax.random.PRNGKey(0)
    B, S, E, Hb, V = 2, 8, 32, 32, 64
    truncate_summary = 6
    special_tokens = {"start": 1, "stop": 2, "mask": 3}

    k0, k1, k2 = jax.random.split(key, 3)
    params = init_params(k0, hidden_size=Hb, outdim=E, vocab_size=V)

    text_states = jax.random.normal(k1, (B, S, E), jnp.float32)
    text_length = jnp.array([8, 5], jnp.int32)
    summary = jax.random.randint(k2, (B, 8), 4, V, jnp.int32)
    summary = summary.at[:, 0].set(special_tokens["start"])
    summary_length = jnp.array([6, 5], jnp.int32)

    out = decoder_forward(params, text_states, text_length,
                          summary, summary_length,
                          truncate_summary, special_tokens)

    jax.block_until_ready(out["instance_losses"])
    jax.block_until_ready(out["sentence_level_attentions"])
    jax.block_until_ready(out["decoded_summary_length"])

    assert out["sentence_level_attentions"].shape == (B, truncate_summary - 2, S)
    assert out["instance_losses"].shape == (B,)
    assert bool(jnp.all(jnp.isfinite(out["instance_losses"])))
    assert bool(jnp.all(jnp.isfinite(out["sentence_level_attentions"])))
    print("KERNEL_OK")
</pallas_src>

<mosaic_0001>
module attributes {stable_mosaic.version = 11 : i64} {
  func.func @_kv_proj_kernel(%arg0: i32, %arg1: memref<16x32xbf16, #tpu.memory_space<vmem>>, %arg2: memref<32x32xbf16, #tpu.memory_space<vmem>>, %arg3: memref<1x32xf32, #tpu.memory_space<vmem>>, %arg4: memref<32x32xbf16, #tpu.memory_space<vmem>>, %arg5: memref<1x32xf32, #tpu.memory_space<vmem>>, %arg6: memref<16x32xbf16, #tpu.memory_space<vmem>>, %arg7: memref<16x32xbf16, #tpu.memory_space<vmem>>) attributes {dimension_semantics = [#tpu.dimension_semantics<parallel>], iteration_bounds = array<i64: 1>, scalar_prefetch = 0 : i64, scratch_operands = 0 : i64, tpu.core_type = #tpu.core_type<tc>, window_params = [{transform_indices = @transform_0, window_bounds = array<i64: 16, 32>}, {pipeline_mode = #tpu.pipeline_mode<synchronous>, transform_indices = @transform_1, window_bounds = array<i64: 32, 32>}, {pipeline_mode = #tpu.pipeline_mode<synchronous>, transform_indices = @transform_2, window_bounds = array<i64: 1, 32>}, {pipeline_mode = #tpu.pipeline_mode<synchronous>, transform_indices = @transform_3, window_bounds = array<i64: 32, 32>}, {pipeline_mode = #tpu.pipeline_mode<synchronous>, transform_indices = @transform_4, window_bounds = array<i64: 1, 32>}, {transform_indices = @transform_5, window_bounds = array<i64: 16, 32>}, {transform_indices = @transform_6, window_bounds = array<i64: 16, 32>}]} {
    %c0 = arith.constant 0 : index
    %c0_0 = arith.constant 0 : index
    %0 = vector.load %arg1[%c0, %c0_0] : memref<16x32xbf16, #tpu.memory_space<vmem>>, vector<16x32xbf16>
    %c0_1 = arith.constant 0 : index
    %c0_2 = arith.constant 0 : index
    %1 = vector.load %arg2[%c0_1, %c0_2] : memref<32x32xbf16, #tpu.memory_space<vmem>>, vector<32x32xbf16>
    %cst = arith.constant dense<0.000000e+00> : vector<16x32xf32>
    %2 = tpu.matmul %0, %1, %cst {dimension_numbers = #tpu.dot_dimension_numbers<[1], [0], [0], [1], [0, 0, 1, 1], [], []>} : vector<16x32xbf16>, vector<32x32xbf16>, vector<16x32xf32> -> vector<16x32xf32>
    %c0_3 = arith.constant 0 : index
    %c0_4 = arith.constant 0 : index
    %3 = vector.load %arg3[%c0_3, %c0_4] : memref<1x32xf32, #tpu.memory_space<vmem>>, vector<1x32xf32>
    %4 = vector.broadcast %3 : vector<1x32xf32> to vector<16x32xf32>
    %5 = arith.addf %2, %4 : vector<16x32xf32>
    %c0_5 = arith.constant 0 : index
    %c0_6 = arith.constant 0 : index
    %6 = vector.load %arg4[%c0_5, %c0_6] : memref<32x32xbf16, #tpu.memory_space<vmem>>, vector<32x32xbf16>
    %cst_7 = arith.constant dense<0.000000e+00> : vector<16x32xf32>
    %7 = tpu.matmul %0, %6, %cst_7 {dimension_numbers = #tpu.dot_dimension_numbers<[1], [0], [0], [1], [0, 0, 1, 1], [], []>} : vector<16x32xbf16>, vector<32x32xbf16>, vector<16x32xf32> -> vector<16x32xf32>
    %c0_8 = arith.constant 0 : index
    %c0_9 = arith.constant 0 : index
    %8 = vector.load %arg5[%c0_8, %c0_9] : memref<1x32xf32, #tpu.memory_space<vmem>>, vector<1x32xf32>
    %9 = vector.broadcast %8 : vector<1x32xf32> to vector<16x32xf32>
    %10 = arith.addf %7, %9 : vector<16x32xf32>
    %11 = arith.truncf %5 : vector<16x32xf32> to vector<16x32xbf16>
    %c0_10 = arith.constant 0 : index
    %c0_11 = arith.constant 0 : index
    %12 = vector.load %arg6[%c0_10, %c0_11] : memref<16x32xbf16, #tpu.memory_space<vmem>>, vector<16x32xbf16>
    tpu.vector_store %arg6[%c0_10, %c0_11], %11 {strides = array<i32>} : memref<16x32xbf16, #tpu.memory_space<vmem>>, vector<16x32xbf16>,
    %13 = arith.truncf %10 : vector<16x32xf32> to vector<16x32xbf16>
    %c0_12 = arith.constant 0 : index
    %c0_13 = arith.constant 0 : index
    %14 = vector.load %arg7[%c0_12, %c0_13] : memref<16x32xbf16, #tpu.memory_space<vmem>>, vector<16x32xbf16>
    tpu.vector_store %arg7[%c0_12, %c0_13], %13 {strides = array<i32>} : memref<16x32xbf16, #tpu.memory_space<vmem>>, vector<16x32xbf16>,
    return
  }
  func.func @transform_0(%arg0: i32) -> (i32, i32) {
    %c0_i32 = arith.constant 0 : i32
    %c0_i32_0 = arith.constant 0 : i32
    return %arg0, %c0_i32 : i32, i32
  }
  func.func @transform_1(%arg0: i32) -> (i32, i32) {
    %c0_i32 = arith.constant 0 : i32
    %c0_i32_0 = arith.constant 0 : i32
    %c0_i32_1 = arith.constant 0 : i32
    return %c0_i32, %c0_i32_0 : i32, i32
  }
  func.func @transform_2(%arg0: i32) -> (i32, i32) {
    %c0_i32 = arith.constant 0 : i32
    %c0_i32_0 = arith.constant 0 : i32
    %c0_i32_1 = arith.constant 0 : i32
    return %c0_i32, %c0_i32_0 : i32, i32
  }
  func.func @transform_3(%arg0: i32) -> (i32, i32) {
    %c0_i32 = arith.constant 0 : i32
    %c0_i32_0 = arith.constant 0 : i32
    %c0_i32_1 = arith.constant 0 : i32
    return %c0_i32, %c0_i32_0 : i32, i32
  }
  func.func @transform_4(%arg0: i32) -> (i32, i32) {
    %c0_i32 = arith.constant 0 : i32
    %c0_i32_0 = arith.constant 0 : i32
    %c0_i32_1 = arith.constant 0 : i32
    return %c0_i32, %c0_i32_0 : i32, i32
  }
  func.func @transform_5(%arg0: i32) -> (i32, i32) {
    %c0_i32 = arith.constant 0 : i32
    %c0_i32_0 = arith.constant 0 : i32
    return %arg0, %c0_i32 : i32, i32
  }
  func.func @transform_6(%arg0: i32) -> (i32, i32) {
    %c0_i32 = arith.constant 0 : i32
    %c0_i32_0 = arith.constant 0 : i32
    return %arg0, %c0_i32 : i32, i32
  }
}

</mosaic_0001>

<llo_original>
// kernel: encode_kv.1
$region0: #{encode_kv.1}
  #allocation0 [shape = 'u32[]', space=smem, size = 0x4, offset = 0x4, fixed_abs, tag = 'smem constant byte address 0x4 - core index']
  #allocation1 [shape = 'u32[144,128]{1,0:T(1,128)}', space=vmem, size = 0x12000, scoped, tag = 'internal scratch']
  %s0 = inlined_call_operand.vmem [shape: bf16[16,32], index: 0, kind: input, shape index: {}]
  %s1 = inlined_call_operand.vmem [shape: bf16[32,32], index: 1, kind: input, shape index: {}]
  %s2 = inlined_call_operand.vmem [shape: f32[1,32], index: 2, kind: input, shape index: {}]
  %s3 = inlined_call_operand.hbm [shape: bf16[32,32], index: 3, kind: input, shape index: {}]
  %s4 = inlined_call_operand.vmem [shape: f32[1,32], index: 4, kind: input, shape index: {}]
  %s5 = inlined_call_operand.hbm [shape: bf16[16,32], index: 5, kind: output, shape index: {0}]
  %s6 = inlined_call_operand.hbm [shape: bf16[16,32], index: 6, kind: output, shape index: {1}]
  %7 = xla_tuple %s5, %s6
  %s8 = sld [smem:[#allocation0]]
  $region42: #{encode_kv.1} parent=0
    _
  %s10 = ssub.s32 1, %s8
  %s11 = scalar_select 0, %s10, %s8
  $region1: #{encode_kv.1} parent=0
    #allocation2 [shape = 'u8[8192]{0}', space=vmem, size = 0x2000, scoped, tag = 'input window, operand 3, single buffered']
    #allocation3 [shape = 's32[1]{0}', space=sflag, size = 0x4, scoped, tag = 'scoped memory for encode_kv.1']
    #allocation4 [shape = 's32[1]{0}', space=sflag, size = 0x4, scoped, tag = 'scoped memory for encode_kv.1']
    #allocation5 [shape = 'u8[4096]{0}', space=vmem, size = 0x1000, scoped, tag = 'output window, operand 0, single buffered']
    #allocation6 [shape = 'u8[4096]{0}', space=vmem, size = 0x1000, scoped, tag = 'output window, operand 1, single buffered']
    #allocation7 [shape = 's32[1]{0}', space=sflag, size = 0x4, scoped, tag = 'scoped memory for encode_kv.1']
    %12 = vsyncpa [#allocation3], 0
    %13 = vsyncpa [#allocation4], 0
    %14 = vsyncpa [#allocation7], 0
    // Predicated region
    $region2: #{encode_kv.1} parent=1 // pred_check
      _
    $region3: #{encode_kv.1} parent=1 // pred_check_branch
      %16 = sbr.rel (0) target = $region5
    $region4: #{encode_kv.1} parent=1 // pred_region
      _
    $region5: #{encode_kv.1} parent=1 // pred_fallthru
      _
    // Predicated region
    $region6: #{encode_kv.1} parent=1 // pred_check
      _
    $region7: #{encode_kv.1} parent=1 // pred_check_branch
      %18 = sbr.rel (0) target = $region9
    $region8: #{encode_kv.1} parent=1 // pred_region
      _
    $region9: #{encode_kv.1} parent=1 // pred_fallthru
      _
    // Predicated region
    $region10: #{encode_kv.1} parent=1 // pred_check
      _
    $region11: #{encode_kv.1} parent=1 // pred_check_branch
      %20 = sbr.rel (0) target = $region13
    $region12: #{encode_kv.1} parent=1 // pred_region
      _
    $region13: #{encode_kv.1} parent=1 // pred_fallthru
      _
    // Predicated region
    $region14: #{encode_kv.1} parent=1 // pred_check
      _
    $region15: #{encode_kv.1} parent=1 // pred_check_branch
      %22 = sbr.rel (0) target = $region17
    $region16: #{encode_kv.1} parent=1 // pred_region
      %s24 = ssub.s32 256, 256
      %25 = vsyncadd [#allocation3], %s24
      %s26 = sshll.u32 [#allocation2], 4
      %s27 = int_to_ptr.vmem [resolvable:$true] %s26
      %32 = dma.hbm_to_vmem [thread:$0]  %s3, 256, %s27, [#allocation3], 64, 64, 4
    $region17: #{encode_kv.1} parent=1 // pred_fallthru
      _
    // Predicated region
    $region18: #{encode_kv.1} parent=1 // pred_check
      _
    $region19: #{encode_kv.1} parent=1 // pred_check_branch
      %34 = sbr.rel (0) target = $region21
    $region20: #{encode_kv.1} parent=1 // pred_region
      _
    $region21: #{encode_kv.1} parent=1 // pred_fallthru
      _
    // Predicated region
    $region22: #{encode_kv.1} parent=1 // pred_check
      _
    $region23: #{encode_kv.1} parent=1 // pred_check_branch
      %36 = sbr.rel (0) target = $region25
    $region24: #{encode_kv.1} parent=1 // pred_region
      %37 = dma.done [#allocation3], 256
    $region25: #{encode_kv.1} parent=1 // pred_fallthru
      _
    %v39 = vld [vmem:[%s0] sm:$0xf]
    %v40 = vld [vmem:[%s0 + $0x4] sm:$0xf]
    %v41 = vld [vmem:[%s1] sm:$0xf]
    %v42 = vld [vmem:[%s1 + $0x4] sm:$0xf]
    %v43 = vld [vmem:[%s1 + $0x8] sm:$0xf]
    %v44 = vld [vmem:[%s1 + $0xc] sm:$0xf]
    %v45 = vld [vmem:[%s2] sm:$0x1]
    %v47 = vlaneseq
    %v48 = vshrl.u32 %v47, 7
    %v49 = vsub.s32 0, %v48
    %v50 = vrot.slane %v45, %v49
    %v54 = vunpack.c.l.b16 %v39
    %v55 = vunpack.c.l.b16 %v40
    %v56 = vpack.c.b16 %v55, %v54
    %v61 = vunpack.c.l.b16 %v41
    %v62 = vunpack.c.l.b16 %v42
    %v63 = vunpack.c.l.b16 %v43
    %v64 = vunpack.c.l.b16 %v44
    %v65 = vpack.c.b16 %v62, %v61
    %v66 = vpack.c.b16 %v64, %v63
    %vm69 = vcmask 261120
    %v71 = vsel %vm69, %v56, 0
    %73 = vmatprep.subr.bf16.mxu0 0
    %74 = vmatpush1.bf16.msra.mxu0 0
    %75 = vmatprep.subr.bf16.mxu0 0
    %76 = vmatpush1.bf16.msra.mxu0 0
    %77 = vmatprep.subr.bf16.mxu0 0
    %78 = vmatpush1.bf16.msra.mxu0 0
    %79 = vmatprep.subr.bf16.mxu0 0
    %80 = vmatpush1.bf16.msra.mxu0 0
    %81 = vmatprep.subr.bf16.mxu0 0
    %82 = vmatpush1.bf16.msra.mxu0 0
    %83 = vmatprep.subr.bf16.mxu0 0
    %84 = vmatpush1.bf16.msra.mxu0 0
    %85 = vmatprep.subr.bf16.mxu0 0
    %86 = vmatpush1.bf16.msra.mxu0 %v66
    %87 = vmatprep.subr.bf16.mxu0 0
    %88 = vmatpush1.bf16.msra.mxu0 %v65
    %89 = vmatprep.subr.bf16.mxu0 0
    %90 = vmatpush2.bf16.msra.mxu0 0
    %91 = vmatprep.subr.bf16.mxu0 0
    %92 = vmatpush2.bf16.msra.mxu0 0
    %93 = vmatprep.subr.bf16.mxu0 0
    %94 = vmatpush2.bf16.msra.mxu0 0
    %95 = vmatprep.subr.bf16.mxu0 0
    %96 = vmatpush2.bf16.msra.mxu0 0
    %97 = vmatprep.subr.bf16.mxu0 0
    %98 = vmatpush2.bf16.msra.mxu0 0
    %99 = vmatprep.subr.bf16.mxu0 0
    %100 = vmatpush2.bf16.msra.mxu0 0
    %101 = vmatprep.subr.bf16.mxu0 0
    %102 = vmatpush2.bf16.msra.mxu0 0
    %103 = vmatprep.subr.bf16.mxu0 0
    %104 = vmatpush2.bf16.msra.mxu0 0
    %105 = vmatprep.mubr.bf16.mxu0 0
    %106 = vmatmul.mubr.bf16.gmra.mxu0 %v71
    %v107 = vpop.f32.mrf.mxu0
    %v108 = vadd.f32 %v50, %v107
    %v109 = vpop.f32.mrf.mxu0
    %v110 = vpop.f32.mrf.mxu0
    %v111 = vadd.f32 %v50, %v110
    %v112 = vpop.f32.mrf.mxu0
    %113 = vdwg.mxu0
    %v114 = vld [vmem:[#allocation2] sm:$0xf]
    %v115 = vld [vmem:[#allocation2 + $0x4] sm:$0xf]
    %v116 = vld [vmem:[#allocation2 + $0x8] sm:$0xf]
    %v117 = vld [vmem:[#allocation2 + $0xc] sm:$0xf]
    %v118 = vld [vmem:[%s4] sm:$0x1]
    %v120 = vlaneseq
    %v121 = vshrl.u32 %v120, 7
    %v122 = vsub.s32 0, %v121
    %v123 = vrot.slane %v118, %v122
    %v129 = vunpack.c.l.b16 %v114
    %v130 = vunpack.c.l.b16 %v115
    %v131 = vunpack.c.l.b16 %v116
    %v132 = vunpack.c.l.b16 %v117
    %v133 = vpack.c.b16 %v130, %v129
    %v134 = vpack.c.b16 %v132, %v131
    %137 = vmatprep.subr.bf16.mxu0 0
    %138 = vmatpush1.bf16.msra.mxu0 0
    %139 = vmatprep.subr.bf16.mxu0 0
    %140 = vmatpush1.bf16.msra.mxu0 0
    %141 = vmatprep.subr.bf16.mxu0 0
    %142 = vmatpush1.bf16.msra.mxu0 0
    %143 = vmatprep.subr.bf16.mxu0 0
    %144 = vmatpush1.bf16.msra.mxu0 0
    %145 = vmatprep.subr.bf16.mxu0 0
    %146 = vmatpush1.bf16.msra.mxu0 0
    %147 = vmatprep.subr.bf16.mxu0 0
    %148 = vmatpush1.bf16.msra.mxu0 0
    %149 = vmatprep.subr.bf16.mxu0 0
    %150 = vmatpush1.bf16.msra.mxu0 %v134
    %151 = vmatprep.subr.bf16.mxu0 0
    %152 = vmatpush1.bf16.msra.mxu0 %v133
    %153 = vmatprep.subr.bf16.mxu0 0
    %154 = vmatpush2.bf16.msra.mxu0 0
    %155 = vmatprep.subr.bf16.mxu0 0
    %156 = vmatpush2.bf16.msra.mxu0 0
    %157 = vmatprep.subr.bf16.mxu0 0
    %158 = vmatpush2.bf16.msra.mxu0 0
    %159 = vmatprep.subr.bf16.mxu0 0
    %160 = vmatpush2.bf16.msra.mxu0 0
    %161 = vmatprep.subr.bf16.mxu0 0
    %162 = vmatpush2.bf16.msra.mxu0 0
    %163 = vmatprep.subr.bf16.mxu0 0
    %164 = vmatpush2.bf16.msra.mxu0 0
    %165 = vmatprep.subr.bf16.mxu0 0
    %166 = vmatpush2.bf16.msra.mxu0 0
    %167 = vmatprep.subr.bf16.mxu0 0
    %168 = vmatpush2.bf16.msra.mxu0 0
    %169 = vmatprep.mubr.bf16.mxu0 0
    %170 = vmatmul.mubr.bf16.gmra.mxu0 %v71
    %v171 = vpop.f32.mrf.mxu0
    %v172 = vadd.f32 %v123, %v171
    %v173 = vpop.f32.mrf.mxu0
    %v174 = vpop.f32.mrf.mxu0
    %v175 = vadd.f32 %v123, %v174
    %v176 = vpop.f32.mrf.mxu0
    %177 = vdwg.mxu0
    %v178 = vpack.c.bf16 %v111, %v108
    %v180 = vunpack.c.l.b16 %v178
    %v181 = vunpack.c.h.b16 %v178
    %v182 = vpack.c.b16 %v180, %v180
    %v183 = vpack.c.b16 %v181, %v181
    %vm186 = vcmask 257024
    %187 = vst.msk [vmem:[#allocation5] sm:$0xf] %vm186, %v182
    %188 = vst.msk [vmem:[#allocation5 + $0x4] sm:$0xf] %vm186, %v183
    %v189 = vpack.c.bf16 %v175, %v172
    %v191 = vunpack.c.l.b16 %v189
    %v192 = vunpack.c.h.b16 %v189
    %v193 = vpack.c.b16 %v191, %v191
    %v194 = vpack.c.b16 %v192, %v192
    %197 = vst.msk [vmem:[#allocation6] sm:$0xf] %vm186, %v193
    %198 = vst.msk [vmem:[#allocation6 + $0x4] sm:$0xf] %vm186, %v194
    // Predicated region
    $region26: #{encode_kv.1} parent=1 // pred_check
      _
    $region27: #{encode_kv.1} parent=1 // pred_check_branch
      %200 = sbr.rel (0) target = $region29
    $region28: #{encode_kv.1} parent=1 // pred_region
      %s202 = ssub.s32 128, 128
      %203 = vsyncadd [#allocation4], %s202
      %s204 = sshll.u32 [#allocation5], 4
      %s205 = int_to_ptr.vmem [resolvable:$true] %s204
      %210 = dma.vmem_to_hbm [thread:$0]  %s205, 128, %s5, [#allocation4], 64, 64, 4
    $region29: #{encode_kv.1} parent=1 // pred_fallthru
      _
    // Predicated region
    $region30: #{encode_kv.1} parent=1 // pred_check
      _
    $region31: #{encode_kv.1} parent=1 // pred_check_branch
      %212 = sbr.rel (0) target = $region33
    $region32: #{encode_kv.1} parent=1 // pred_region
      %s214 = ssub.s32 128, 128
      %215 = vsyncadd [#allocation7], %s214
      %s216 = sshll.u32 [#allocation6], 4
      %s217 = int_to_ptr.vmem [resolvable:$true] %s216
      %222 = dma.vmem_to_hbm [thread:$0]  %s217, 128, %s6, [#allocation7], 64, 64, 4
    $region33: #{encode_kv.1} parent=1 // pred_fallthru
      _
    // Predicated region
    $region34: #{encode_kv.1} parent=1 // pred_check
      _
    $region35: #{encode_kv.1} parent=1 // pred_check_branch
      %224 = sbr.rel (0) target = $region37
    $region36: #{encode_kv.1} parent=1 // pred_region
      %225 = dma.done [#allocation4], 128
    $region37: #{encode_kv.1} parent=1 // pred_fallthru
      _
    // Predicated region
    $region38: #{encode_kv.1} parent=1 // pred_check
      _
    $region39: #{encode_kv.1} parent=1 // pred_check_branch
      %227 = sbr.rel (0) target = $region41
    $region40: #{encode_kv.1} parent=1 // pred_region
      %228 = dma.done [#allocation7], 128
    $region41: #{encode_kv.1} parent=1 // pred_fallthru
      _
    %229 = vsyncpa [#allocation3], 1
    %230 = vsyncpa [#allocation4], 1
    %231 = vsyncpa [#allocation7], 1

</llo_original>
